<compile_context>
chip_gen: v5e
topology: v5e:2x2
jax: 0.10.0
libtpu: 0.0.40
codegen_flags: <defaults>
</compile_context>

<pallas_src>
import numpy as np
import jax
import jax.numpy as jnp
from jax import lax
from jax.experimental import pallas as pl
from jax.experimental.pallas import tpu as pltpu


# ----------------------------------------------------------------------------
# Host-side parameter setup: conv / maxpool as matrices, then algebraic folds.
# ----------------------------------------------------------------------------
def conv3x3_same_as_matrix(w, H, W):
    """w: (Cout, Cin, 3, 3) numpy.  Returns A of shape (Cin*H*W, Cout*H*W)
    such that y_flat = x_flat @ A equals Conv2d(k=3, stride=1, pad=1) (no bias),
    with flat index = c*H*W + h*W + w."""
    Cout, Cin, KH, KW = w.shape
    A = np.zeros((Cin * H * W, Cout * H * W), np.float32)
    for co in range(Cout):
        for ci in range(Cin):
            for kh in range(KH):
                dh = kh - 1
                for kw in range(KW):
                    dw = kw - 1
                    for ho in range(H):
                        hi = ho + dh
                        if hi < 0 or hi >= H:
                            continue
                        for wo in range(W):
                            wi = wo + dw
                            if wi < 0 or wi >= W:
                                continue
                            A[ci * H * W + hi * W + wi,
                              co * H * W + ho * W + wo] = w[co, ci, kh, kw]
    return A


def maxpool2_select_matrices(C, H, W):
    """Returns G of shape (4, C*H*W, C*(H//2)*(W//2)); maxpool2x2(x_flat) ==
    elementwise max over k of (x_flat @ G[k]).  Each column of G[k] has exactly
    one 1, so relu(z) @ G[k] == relu(z @ G[k])."""
    Ho, Wo = H // 2, W // 2
    G = np.zeros((4, C * H * W, C * Ho * Wo), np.float32)
    k = 0
    for a in range(2):
        for b in range(2):
            for c in range(C):
                for i in range(Ho):
                    for j in range(Wo):
                        G[k, c * H * W + (2 * i + a) * W + (2 * j + b),
                          c * Ho * Wo + i * Wo + j] = 1.0
            k += 1
    return G


# ----------------------------------------------------------------------------
# Pallas kernel: whole forward pass (8 tiny matmuls) resident in VMEM.
# ----------------------------------------------------------------------------
def a3c_forward_kernel(x_ref, m_ref,
                       A1_ref, b1_ref, A2_ref, b2_ref,
                       Wm_ref, bm_ref,
                       W1x_ref, W1m_ref, bfc1_ref,
                       W2_ref, bfc2_ref,
                       Wh1_ref, bh1_ref, Wh2_ref, bh2_ref,
                       out_ref):
    f32 = jnp.float32

    def mm(a, b):
        return jnp.dot(a, b, preferred_element_type=f32)

    # Independent branch of fc1: x @ W1x.  No dependence on the conv chain, so
    # the MXU weight push / drain overlaps with the conv-stage matmuls below.
    xw = mm(x_ref[...], W1x_ref[...])

    # Stage 1: conv1(3x3,pad1)+bias+ReLU then maxpool2x2, folded into one wide
    # matmul (pool-selection matrices pre-multiplied into the conv operator,
    # the 4 pooling taps stacked along N) + a 4-way slice-max on the VPU.
    t1 = jnp.maximum(mm(m_ref[...], A1_ref[...]) + b1_ref[...], 0.0)
    P1 = t1.shape[1] // 4
    p1 = jnp.maximum(jnp.maximum(t1[:, 0 * P1:1 * P1], t1[:, 1 * P1:2 * P1]),
                     jnp.maximum(t1[:, 2 * P1:3 * P1], t1[:, 3 * P1:4 * P1]))

    # Stage 2: conv2 + ReLU + maxpool, same folded form.
    t2 = jnp.maximum(mm(p1, A2_ref[...]) + b2_ref[...], 0.0)
    P2 = t2.shape[1] // 4
    p2 = jnp.maximum(jnp.maximum(t2[:, 0 * P2:1 * P2], t2[:, 1 * P2:2 * P2]),
                     jnp.maximum(t2[:, 2 * P2:3 * P2], t2[:, 3 * P2:4 * P2]))

    # fc_map : Linear(conv_out, 20) + ReLU
    mf = jnp.maximum(mm(p2, Wm_ref[...]) + bm_ref[...], 0.0)

    # fc : cat((x, mf)) @ W1.T == x @ W1x + mf @ W1m  (concat eliminated).
    # TODO(synk): Dropout(p=0.2) implemented as identity (inference semantics).
    h1 = jnp.maximum(xw + mm(mf, W1m_ref[...]) + bfc1_ref[...], 0.0)
    h2 = jnp.maximum(mm(h1, W2_ref[...]) + bfc2_ref[...], 0.0)

    # Fused policy + value heads:
    #   Wh1 = [Wp1 | Wv1] (64,64), Wh2 = [[Wp2, 0], [0, Wv2]] (64, a_dim+1).
    hv = jnp.maximum(mm(h2, Wh1_ref[...]) + bh1_ref[...], 0.0)
    out_ref[...] = mm(hv, Wh2_ref[...]) + bh2_ref[...]


def model_forward(x, map_info, kp):
    """x: (B, s_dim) f32; map_info: (B, H, W) f32 (single channel).
    Returns (logits (B, a_dim), values (B, 1))."""
    B = x.shape[0]
    H, W = map_info.shape[-2], map_info.shape[-1]
    m_flat = map_info.reshape(B, H * W)
    a_dim = kp["Wh2"].shape[1] - 1

    inputs = (x, m_flat,
              kp["A1"], kp["b1"], kp["A2"], kp["b2"],
              kp["Wm"], kp["bm"],
              kp["W1x"], kp["W1m"], kp["bfc1"],
              kp["W2"], kp["bfc2"],
              kp["Wh1"], kp["bh1"], kp["Wh2"], kp["bh2"])

    vmem = pl.BlockSpec(memory_space=pltpu.MemorySpace.VMEM)
    out = pl.pallas_call(
        a3c_forward_kernel,
        out_shape=jax.ShapeDtypeStruct((B, a_dim + 1), jnp.float32),
        in_specs=[vmem] * len(inputs),
        out_specs=vmem,
    )(*inputs)
    return out[:, :a_dim], out[:, a_dim:]


# ----------------------------------------------------------------------------
# Pure-JAX reference (mirrors the PyTorch forward, eval mode) for validation.
# ----------------------------------------------------------------------------
def _pool2(x):
    B, C, H, W = x.shape
    return x.reshape(B, C, H // 2, 2, W // 2, 2).max(axis=(3, 5))


def reference_forward(x, map_info, rp):
    dn = ("NCHW", "OIHW", "NCHW")
    m = map_info[:, None, :, :]
    f1 = lax.conv_general_dilated(m, rp["w1"], (1, 1), [(1, 1), (1, 1)],
                                  dimension_numbers=dn)
    f1 = jnp.maximum(f1 + rp["cb1"][None, :, None, None], 0.0)
    p1 = _pool2(f1)
    f2 = lax.conv_general_dilated(p1, rp["w2"], (1, 1), [(1, 1), (1, 1)],
                                  dimension_numbers=dn)
    f2 = jnp.maximum(f2 + rp["cb2"][None, :, None, None], 0.0)
    p2 = _pool2(f2)
    flat = p2.reshape(p2.shape[0], -1)
    mf = jnp.maximum(flat @ rp["Wm"].T + rp["bm"], 0.0)
    cat = jnp.concatenate([x, mf], axis=1)
    h1 = jnp.maximum(cat @ rp["W1"].T + rp["bfc1"], 0.0)
    h2 = jnp.maximum(h1 @ rp["W2"].T + rp["bfc2"], 0.0)
    logits = jnp.maximum(h2 @ rp["Wp1"].T + rp["bp1"], 0.0) @ rp["Wp2"].T + rp["bp2"]
    values = jnp.maximum(h2 @ rp["Wv1"].T + rp["bv1"], 0.0) @ rp["Wv2"].T + rp["bv2"]
    return logits, values


# ----------------------------------------------------------------------------
def build_params(s_dim, a_dim, row, col):
    assert row % 4 == 0 and col % 4 == 0, \
        "conv/pool folding assumes row and col divisible by 4"

    rng = np.random.default_rng(0)

    def rand(*shape):
        return (rng.standard_normal(shape) * 0.1).astype(np.float32)

    H, W = row, col
    conv_out = 4 * (row // 4) * (col // 4)

    raw = dict(
        w1=rand(2, 1, 3, 3), cb1=rand(2),
        w2=rand(4, 2, 3, 3), cb2=rand(4),
        Wm=rand(20, conv_out), bm=rand(20),
        W1=rand(128, s_dim + 20), bfc1=rand(128),
        W2=rand(64, 128), bfc2=rand(64),
        Wp1=rand(32, 64), bp1=rand(32),
        Wp2=rand(a_dim, 32), bp2=rand(a_dim),
        Wv1=rand(32, 64), bv1=rand(32),
        Wv2=rand(1, 32), bv2=rand(1),
    )

    # --- fold conv+bias(+ReLU) and maxpool into stacked wide operators -------
    A1 = conv3x3_same_as_matrix(raw["w1"], H, W)              # (H*W, 2*H*W)
    G1 = maxpool2_select_matrices(2, H, W)                    # (4, 2*H*W, 2*Ho*Wo)
    b1f = np.repeat(raw["cb1"], H * W)                        # (2*H*W,)
    A1s = np.concatenate([A1 @ G1[k] for k in range(4)], axis=1)
    b1s = np.concatenate([b1f @ G1[k] for k in range(4)])[None, :]

    H2s, W2s = H // 2, W // 2
    A2 = conv3x3_same_as_matrix(raw["w2"], H2s, W2s)          # (2*H2*W2, 4*H2*W2)
    G2 = maxpool2_select_matrices(4, H2s, W2s)
    b2f = np.repeat(raw["cb2"], H2s * W2s)
    A2s = np.concatenate([A2 @ G2[k] for k in range(4)], axis=1)
    b2s = np.concatenate([b2f @ G2[k] for k in range(4)])[None, :]

    # --- split fc1 weight to eliminate the concat -----------------------------
    W1T = raw["W1"].T.copy()                                  # (s_dim+20, 128)
    W1x = W1T[:s_dim].copy()                                  # (s_dim, 128)
    W1m = W1T[s_dim:].copy()                                  # (20, 128)

    # --- fused policy / value heads ------------------------------------------
    Wh1 = np.concatenate([raw["Wp1"].T, raw["Wv1"].T], axis=1)   # (64, 64)
    bh1 = np.concatenate([raw["bp1"], raw["bv1"]])[None, :]      # (1, 64)
    Wh2 = np.zeros((64, a_dim + 1), np.float32)                  # block-diag
    Wh2[:32, :a_dim] = raw["Wp2"].T
    Wh2[32:, a_dim:] = raw["Wv2"].T
    bh2 = np.concatenate([raw["bp2"], raw["bv2"]])[None, :]      # (1, a_dim+1)

    kp = dict(
        A1=A1s, b1=b1s, A2=A2s, b2=b2s,
        Wm=raw["Wm"].T.copy(), bm=raw["bm"][None, :],
        W1x=W1x, W1m=W1m, bfc1=raw["bfc1"][None, :],
        W2=raw["W2"].T.copy(), bfc2=raw["bfc2"][None, :],
        Wh1=Wh1, bh1=bh1, Wh2=Wh2, bh2=bh2,
    )

    # Guard for large maps: all operands are VMEM-resident (single grid point)
    # and the dense conv operators scale O((H*W)^2); fail loudly well below the
    # v7x 64 MiB physical VMEM instead of OOM-ing / spilling.
    total_bytes = sum(int(v.size) * 4 for v in kp.values())
    assert total_bytes < 24 * 1024 * 1024, (
        "folded weights too large for a single VMEM-resident kernel; tile the "
        "conv stage (grid or pltpu.roll shift-and-add) for larger maps")

    raw = {k: jnp.asarray(v) for k, v in raw.items()}
    kp = {k: jnp.asarray(v) for k, v in kp.items()}
    return raw, kp


if __name__ == "__main__":
    B, s_dim, a_dim, row, col = 2, 8, 4, 16, 16
    raw, kp = build_params(s_dim, a_dim, row, col)

    key = jax.random.PRNGKey(0)
    kx, km = jax.random.split(key)
    x = jax.random.normal(kx, (B, s_dim), dtype=jnp.float32)
    map_info = (jax.random.uniform(km, (B, row, col)) > 0.5).astype(jnp.float32)

    logits, values = model_forward(x, map_info, kp)
    logits, values = jax.block_until_ready((logits, values))

    ref_logits, ref_values = reference_forward(x, map_info, raw)
    assert logits.shape == (B, a_dim) and values.shape == (B, 1)
    np.testing.assert_allclose(np.asarray(logits), np.asarray(ref_logits),
                               rtol=1e-3, atol=1e-3)
    np.testing.assert_allclose(np.asarray(values), np.asarray(ref_values),
                               rtol=1e-3, atol=1e-3)
    print("KERNEL_OK")
</pallas_src>

<mosaic_0001>
module attributes {stable_mosaic.version = 11 : i64} {
  func.func @a3c_forward_kernel(%arg0: memref<2x8xf32, #tpu.memory_space<vmem>>, %arg1: memref<2x256xf32, #tpu.memory_space<vmem>>, %arg2: memref<256x512xf32, #tpu.memory_space<vmem>>, %arg3: memref<1x512xf32, #tpu.memory_space<vmem>>, %arg4: memref<128x256xf32, #tpu.memory_space<vmem>>, %arg5: memref<1x256xf32, #tpu.memory_space<vmem>>, %arg6: memref<64x20xf32, #tpu.memory_space<vmem>>, %arg7: memref<1x20xf32, #tpu.memory_space<vmem>>, %arg8: memref<8x128xf32, #tpu.memory_space<vmem>>, %arg9: memref<20x128xf32, #tpu.memory_space<vmem>>, %arg10: memref<1x128xf32, #tpu.memory_space<vmem>>, %arg11: memref<128x64xf32, #tpu.memory_space<vmem>>, %arg12: memref<1x64xf32, #tpu.memory_space<vmem>>, %arg13: memref<64x64xf32, #tpu.memory_space<vmem>>, %arg14: memref<1x64xf32, #tpu.memory_space<vmem>>, %arg15: memref<64x5xf32, #tpu.memory_space<vmem>>, %arg16: memref<1x5xf32, #tpu.memory_space<vmem>>, %arg17: memref<2x5xf32, #tpu.memory_space<vmem>>) attributes {dimension_semantics = [], scalar_prefetch = 0 : i64, scratch_operands = 0 : i64, tpu.core_type = #tpu.core_type<tc>} {
    %c0 = arith.constant 0 : index
    %c0_0 = arith.constant 0 : index
    %0 = vector.load %arg0[%c0, %c0_0] : memref<2x8xf32, #tpu.memory_space<vmem>>, vector<2x8xf32>
    %c0_1 = arith.constant 0 : index
    %c0_2 = arith.constant 0 : index
    %1 = vector.load %arg8[%c0_1, %c0_2] : memref<8x128xf32, #tpu.memory_space<vmem>>, vector<8x128xf32>
    %cst = arith.constant dense<0.000000e+00> : vector<2x128xf32>
    %2 = tpu.matmul %0, %1, %cst {dimension_numbers = #tpu.dot_dimension_numbers<[1], [0], [0], [1], [0, 0, 1, 1], [], []>} : vector<2x8xf32>, vector<8x128xf32>, vector<2x128xf32> -> vector<2x128xf32>
    %c0_3 = arith.constant 0 : index
    %c0_4 = arith.constant 0 : index
    %3 = vector.load %arg1[%c0_3, %c0_4] : memref<2x256xf32, #tpu.memory_space<vmem>>, vector<2x256xf32>
    %c0_5 = arith.constant 0 : index
    %c0_6 = arith.constant 0 : index
    %4 = vector.load %arg2[%c0_5, %c0_6] : memref<256x512xf32, #tpu.memory_space<vmem>>, vector<256x512xf32>
    %cst_7 = arith.constant dense<0.000000e+00> : vector<2x512xf32>
    %5 = tpu.matmul %3, %4, %cst_7 {dimension_numbers = #tpu.dot_dimension_numbers<[1], [0], [0], [1], [0, 0, 1, 1], [], []>} : vector<2x256xf32>, vector<256x512xf32>, vector<2x512xf32> -> vector<2x512xf32>
    %c0_8 = arith.constant 0 : index
    %c0_9 = arith.constant 0 : index
    %6 = vector.load %arg3[%c0_8, %c0_9] : memref<1x512xf32, #tpu.memory_space<vmem>>, vector<1x512xf32>
    %7 = vector.broadcast %6 : vector<1x512xf32> to vector<2x512xf32>
    %8 = arith.addf %5, %7 : vector<2x512xf32>
    %cst_10 = arith.constant 0.000000e+00 : f32
    %9 = vector.broadcast %cst_10 : f32 to vector<2x512xf32>
    %10 = arith.maximumf %8, %9 : vector<2x512xf32>
    %11 = vector.extract_strided_slice %10 {offsets = [0, 0], sizes = [2, 128], strides = [1, 1]} : vector<2x512xf32> to vector<2x128xf32>
    %12 = vector.extract_strided_slice %10 {offsets = [0, 128], sizes = [2, 128], strides = [1, 1]} : vector<2x512xf32> to vector<2x128xf32>
    %13 = arith.maximumf %11, %12 : vector<2x128xf32>
    %14 = vector.extract_strided_slice %10 {offsets = [0, 256], sizes = [2, 128], strides = [1, 1]} : vector<2x512xf32> to vector<2x128xf32>
    %15 = vector.extract_strided_slice %10 {offsets = [0, 384], sizes = [2, 128], strides = [1, 1]} : vector<2x512xf32> to vector<2x128xf32>
    %16 = arith.maximumf %14, %15 : vector<2x128xf32>
    %17 = arith.maximumf %13, %16 : vector<2x128xf32>
    %c0_11 = arith.constant 0 : index
    %c0_12 = arith.constant 0 : index
    %18 = vector.load %arg4[%c0_11, %c0_12] : memref<128x256xf32, #tpu.memory_space<vmem>>, vector<128x256xf32>
    %cst_13 = arith.constant dense<0.000000e+00> : vector<2x256xf32>
    %19 = tpu.matmul %17, %18, %cst_13 {dimension_numbers = #tpu.dot_dimension_numbers<[1], [0], [0], [1], [0, 0, 1, 1], [], []>} : vector<2x128xf32>, vector<128x256xf32>, vector<2x256xf32> -> vector<2x256xf32>
    %c0_14 = arith.constant 0 : index
    %c0_15 = arith.constant 0 : index
    %20 = vector.load %arg5[%c0_14, %c0_15] : memref<1x256xf32, #tpu.memory_space<vmem>>, vector<1x256xf32>
    %21 = vector.broadcast %20 : vector<1x256xf32> to vector<2x256xf32>
    %22 = arith.addf %19, %21 : vector<2x256xf32>
    %cst_16 = arith.constant 0.000000e+00 : f32
    %23 = vector.broadcast %cst_16 : f32 to vector<2x256xf32>
    %24 = arith.maximumf %22, %23 : vector<2x256xf32>
    %25 = vector.extract_strided_slice %24 {offsets = [0, 0], sizes = [2, 64], strides = [1, 1]} : vector<2x256xf32> to vector<2x64xf32>
    %26 = vector.extract_strided_slice %24 {offsets = [0, 64], sizes = [2, 64], strides = [1, 1]} : vector<2x256xf32> to vector<2x64xf32>
    %27 = arith.maximumf %25, %26 : vector<2x64xf32>
    %28 = vector.extract_strided_slice %24 {offsets = [0, 128], sizes = [2, 64], strides = [1, 1]} : vector<2x256xf32> to vector<2x64xf32>
    %29 = vector.extract_strided_slice %24 {offsets = [0, 192], sizes = [2, 64], strides = [1, 1]} : vector<2x256xf32> to vector<2x64xf32>
    %30 = arith.maximumf %28, %29 : vector<2x64xf32>
    %31 = arith.maximumf %27, %30 : vector<2x64xf32>
    %c0_17 = arith.constant 0 : index
    %c0_18 = arith.constant 0 : index
    %32 = vector.load %arg6[%c0_17, %c0_18] : memref<64x20xf32, #tpu.memory_space<vmem>>, vector<64x20xf32>
    %cst_19 = arith.constant dense<0.000000e+00> : vector<2x20xf32>
    %33 = tpu.matmul %31, %32, %cst_19 {dimension_numbers = #tpu.dot_dimension_numbers<[1], [0], [0], [1], [0, 0, 1, 1], [], []>} : vector<2x64xf32>, vector<64x20xf32>, vector<2x20xf32> -> vector<2x20xf32>
    %c0_20 = arith.constant 0 : index
    %c0_21 = arith.constant 0 : index
    %34 = vector.load %arg7[%c0_20, %c0_21] : memref<1x20xf32, #tpu.memory_space<vmem>>, vector<1x20xf32>
    %35 = vector.broadcast %34 : vector<1x20xf32> to vector<2x20xf32>
    %36 = arith.addf %33, %35 : vector<2x20xf32>
    %cst_22 = arith.constant 0.000000e+00 : f32
    %37 = vector.broadcast %cst_22 : f32 to vector<2x20xf32>
    %38 = arith.maximumf %36, %37 : vector<2x20xf32>
    %c0_23 = arith.constant 0 : index
    %c0_24 = arith.constant 0 : index
    %39 = vector.load %arg9[%c0_23, %c0_24] : memref<20x128xf32, #tpu.memory_space<vmem>>, vector<20x128xf32>
    %cst_25 = arith.constant dense<0.000000e+00> : vector<2x128xf32>
    %40 = tpu.matmul %38, %39, %cst_25 {dimension_numbers = #tpu.dot_dimension_numbers<[1], [0], [0], [1], [0, 0, 1, 1], [], []>} : vector<2x20xf32>, vector<20x128xf32>, vector<2x128xf32> -> vector<2x128xf32>
    %41 = arith.addf %2, %40 : vector<2x128xf32>
    %c0_26 = arith.constant 0 : index
    %c0_27 = arith.constant 0 : index
    %42 = vector.load %arg10[%c0_26, %c0_27] : memref<1x128xf32, #tpu.memory_space<vmem>>, vector<1x128xf32>
    %43 = vector.broadcast %42 : vector<1x128xf32> to vector<2x128xf32>
    %44 = arith.addf %41, %43 : vector<2x128xf32>
    %cst_28 = arith.constant 0.000000e+00 : f32
    %45 = vector.broadcast %cst_28 : f32 to vector<2x128xf32>
    %46 = arith.maximumf %44, %45 : vector<2x128xf32>
    %c0_29 = arith.constant 0 : index
    %c0_30 = arith.constant 0 : index
    %47 = vector.load %arg11[%c0_29, %c0_30] : memref<128x64xf32, #tpu.memory_space<vmem>>, vector<128x64xf32>
    %cst_31 = arith.constant dense<0.000000e+00> : vector<2x64xf32>
    %48 = tpu.matmul %46, %47, %cst_31 {dimension_numbers = #tpu.dot_dimension_numbers<[1], [0], [0], [1], [0, 0, 1, 1], [], []>} : vector<2x128xf32>, vector<128x64xf32>, vector<2x64xf32> -> vector<2x64xf32>
    %c0_32 = arith.constant 0 : index
    %c0_33 = arith.constant 0 : index
    %49 = vector.load %arg12[%c0_32, %c0_33] : memref<1x64xf32, #tpu.memory_space<vmem>>, vector<1x64xf32>
    %50 = vector.broadcast %49 : vector<1x64xf32> to vector<2x64xf32>
    %51 = arith.addf %48, %50 : vector<2x64xf32>
    %cst_34 = arith.constant 0.000000e+00 : f32
    %52 = vector.broadcast %cst_34 : f32 to vector<2x64xf32>
    %53 = arith.maximumf %51, %52 : vector<2x64xf32>
    %c0_35 = arith.constant 0 : index
    %c0_36 = arith.constant 0 : index
    %54 = vector.load %arg13[%c0_35, %c0_36] : memref<64x64xf32, #tpu.memory_space<vmem>>, vector<64x64xf32>
    %cst_37 = arith.constant dense<0.000000e+00> : vector<2x64xf32>
    %55 = tpu.matmul %53, %54, %cst_37 {dimension_numbers = #tpu.dot_dimension_numbers<[1], [0], [0], [1], [0, 0, 1, 1], [], []>} : vector<2x64xf32>, vector<64x64xf32>, vector<2x64xf32> -> vector<2x64xf32>
    %c0_38 = arith.constant 0 : index
    %c0_39 = arith.constant 0 : index
    %56 = vector.load %arg14[%c0_38, %c0_39] : memref<1x64xf32, #tpu.memory_space<vmem>>, vector<1x64xf32>
    %57 = vector.broadcast %56 : vector<1x64xf32> to vector<2x64xf32>
    %58 = arith.addf %55, %57 : vector<2x64xf32>
    %cst_40 = arith.constant 0.000000e+00 : f32
    %59 = vector.broadcast %cst_40 : f32 to vector<2x64xf32>
    %60 = arith.maximumf %58, %59 : vector<2x64xf32>
    %c0_41 = arith.constant 0 : index
    %c0_42 = arith.constant 0 : index
    %61 = vector.load %arg15[%c0_41, %c0_42] : memref<64x5xf32, #tpu.memory_space<vmem>>, vector<64x5xf32>
    %cst_43 = arith.constant dense<0.000000e+00> : vector<2x5xf32>
    %62 = tpu.matmul %60, %61, %cst_43 {dimension_numbers = #tpu.dot_dimension_numbers<[1], [0], [0], [1], [0, 0, 1, 1], [], []>} : vector<2x64xf32>, vector<64x5xf32>, vector<2x5xf32> -> vector<2x5xf32>
    %c0_44 = arith.constant 0 : index
    %c0_45 = arith.constant 0 : index
    %63 = vector.load %arg16[%c0_44, %c0_45] : memref<1x5xf32, #tpu.memory_space<vmem>>, vector<1x5xf32>
    %64 = vector.broadcast %63 : vector<1x5xf32> to vector<2x5xf32>
    %65 = arith.addf %62, %64 : vector<2x5xf32>
    %c0_46 = arith.constant 0 : index
    %c0_47 = arith.constant 0 : index
    %66 = vector.load %arg17[%c0_46, %c0_47] : memref<2x5xf32, #tpu.memory_space<vmem>>, vector<2x5xf32>
    tpu.vector_store %arg17[%c0_46, %c0_47], %65 {strides = array<i32>} : memref<2x5xf32, #tpu.memory_space<vmem>>, vector<2x5xf32>,
    return
  }
}

</mosaic_0001>

<llo_original>
// kernel: tpu_custom_call.1
$region0: #{tpu_custom_call.1}
  #allocation0 [shape = 'u32[]', space=smem, size = 0x4, offset = 0x4, fixed_abs, tag = 'smem constant byte address 0x4 - core index']
  #allocation1 [shape = 'u32[72,128]{1,0:T(1,128)}', space=vmem, size = 0x9000, scoped, tag = 'internal scratch']
  %s0 = inlined_call_operand.hbm [shape: f32[2,8], index: 0, kind: input, shape index: {}]
  %s1 = inlined_call_operand.hbm [shape: f32[2,256], index: 1, kind: input, shape index: {}]
  %s2 = inlined_call_operand.hbm [shape: f32[256,512], index: 2, kind: input, shape index: {}]
  %s3 = inlined_call_operand.hbm [shape: f32[1,512], index: 3, kind: input, shape index: {}]
  %s4 = inlined_call_operand.vmem [shape: f32[128,256], index: 4, kind: input, shape index: {}]
  %s5 = inlined_call_operand.vmem [shape: f32[1,256], index: 5, kind: input, shape index: {}]
  %s6 = inlined_call_operand.vmem [shape: f32[64,20], index: 6, kind: input, shape index: {}]
  %s7 = inlined_call_operand.vmem [shape: f32[1,20], index: 7, kind: input, shape index: {}]
  %s8 = inlined_call_operand.hbm [shape: f32[8,128], index: 8, kind: input, shape index: {}]
  %s9 = inlined_call_operand.vmem [shape: f32[20,128], index: 9, kind: input, shape index: {}]
  %s10 = inlined_call_operand.vmem [shape: f32[1,128], index: 10, kind: input, shape index: {}]
  %s11 = inlined_call_operand.vmem [shape: f32[128,64], index: 11, kind: input, shape index: {}]
  %s12 = inlined_call_operand.vmem [shape: f32[1,64], index: 12, kind: input, shape index: {}]
  %s13 = inlined_call_operand.hbm [shape: f32[64,64], index: 13, kind: input, shape index: {}]
  %s14 = inlined_call_operand.vmem [shape: f32[1,64], index: 14, kind: input, shape index: {}]
  %s15 = inlined_call_operand.vmem [shape: f32[64,5], index: 15, kind: input, shape index: {}]
  %s16 = inlined_call_operand.vmem [shape: f32[1,5], index: 16, kind: input, shape index: {}]
  %s17 = inlined_call_operand.hbm [shape: f32[2,5], index: 17, kind: output, shape index: {}]
  %s18 = sld [smem:[#allocation0]]
  $region102: #{tpu_custom_call.1} parent=0
    _
  %s20 = ssub.s32 1, %s18
  %s21 = scalar_select 0, %s20, %s18
  $region1: #{tpu_custom_call.1} parent=0
    #allocation2 [shape = 'u8[1024]{0}', space=vmem, size = 0x400, scoped, tag = 'input window, operand 0, single buffered']
    #allocation3 [shape = 's32[1]{0}', space=sflag, size = 0x4, scoped, tag = 'scoped memory for tpu_custom_call.1']
    #allocation4 [shape = 's32[1]{0}', space=sflag, size = 0x4, scoped, tag = 'scoped memory for tpu_custom_call.1']
    #allocation5 [shape = 'u8[2048]{0}', space=vmem, size = 0x800, scoped, tag = 'input window, operand 1, single buffered']
    #allocation6 [shape = 's32[1]{0}', space=sflag, size = 0x4, scoped, tag = 'scoped memory for tpu_custom_call.1']
    #allocation7 [shape = 'u8[524288]{0}', space=vmem, size = 0x80000, scoped, tag = 'input window, operand 2, single buffered']
    #allocation8 [shape = 'u8[2048]{0}', space=vmem, size = 0x800, scoped, tag = 'input window, operand 3, single buffered']
    #allocation9 [shape = 's32[1]{0}', space=sflag, size = 0x4, scoped, tag = 'scoped memory for tpu_custom_call.1']
    #allocation10 [shape = 'u8[4096]{0}', space=vmem, size = 0x1000, scoped, tag = 'input window, operand 8, single buffered']
    #allocation11 [shape = 'u8[32768]{0}', space=vmem, size = 0x8000, scoped, tag = 'input window, operand 13, single buffered']
    #allocation12 [shape = 's32[1]{0}', space=sflag, size = 0x4, scoped, tag = 'scoped memory for tpu_custom_call.1']
    #allocation13 [shape = 'u8[1024]{0}', space=vmem, size = 0x400, scoped, tag = 'output window, operand 0, single buffered']
    %22 = vsyncpa [#allocation3], 0
    %23 = vsyncpa [#allocation6], 0
    %24 = vsyncpa [#allocation9], 0
    %25 = vsyncpa [#allocation12], 0
    %26 = vsyncpa [#allocation4], 0
    // Predicated region
    $region2: #{tpu_custom_call.1} parent=1 // pred_check
      _
    $region3: #{tpu_custom_call.1} parent=1 // pred_check_branch
      %28 = sbr.rel (0) target = $region5
    $region4: #{tpu_custom_call.1} parent=1 // pred_region
      %30 = vsyncadd [#allocation3], 0
      %s32 = sshll.u32 %s0, 4
      %s33 = int_to_ptr.hbm [resolvable:$true] %s32
      %s34 = sshll.u32 [#allocation2], 4
      %s35 = int_to_ptr.vmem [resolvable:$true] %s34
      %37 = dma.hbm_to_vmem [thread:$0]  %s33, 32, %s35, [#allocation3]
    $region5: #{tpu_custom_call.1} parent=1 // pred_fallthru
      _
    // Predicated region
    $region6: #{tpu_custom_call.1} parent=1 // pred_check
      _
    $region7: #{tpu_custom_call.1} parent=1 // pred_check_branch
      %39 = sbr.rel (0) target = $region9
    $region8: #{tpu_custom_call.1} parent=1 // pred_region
      %41 = vsyncadd [#allocation6], 0
      %s43 = sshll.u32 %s1, 4
      %s44 = int_to_ptr.hbm [resolvable:$true] %s43
      %s45 = sshll.u32 [#allocation5], 4
      %s46 = int_to_ptr.vmem [resolvable:$true] %s45
      %48 = dma.hbm_to_vmem [thread:$0]  %s44, 64, %s46, [#allocation6]
    $region9: #{tpu_custom_call.1} parent=1 // pred_fallthru
      _
    // Predicated region
    $region10: #{tpu_custom_call.1} parent=1 // pred_check
      _
    $region11: #{tpu_custom_call.1} parent=1 // pred_check_branch
      %50 = sbr.rel (0) target = $region13
    $region12: #{tpu_custom_call.1} parent=1 // pred_region
      %52 = vsyncadd [#allocation6], 0
      %s53 = sshll.u32 %s2, 4
      %s54 = int_to_ptr.hbm [resolvable:$true] %s53
      %s55 = sshll.u32 [#allocation7], 4
      %s56 = int_to_ptr.vmem [resolvable:$true] %s55
      %61 = dma.hbm_to_vmem [thread:$0]  %s54, 16384, %s56, [#allocation6], 512, 512, 32
    $region13: #{tpu_custom_call.1} parent=1 // pred_fallthru
      _
    // Predicated region
    $region14: #{tpu_custom_call.1} parent=1 // pred_check
      _
    $region15: #{tpu_custom_call.1} parent=1 // pred_check_branch
      %63 = sbr.rel (0) target = $region17
    $region16: #{tpu_custom_call.1} parent=1 // pred_region
      %65 = vsyncadd [#allocation9], 0
      %s67 = sshll.u32 %s3, 4
      %s68 = int_to_ptr.hbm [resolvable:$true] %s67
      %s69 = sshll.u32 [#allocation8], 4
      %s70 = int_to_ptr.vmem [resolvable:$true] %s69
      %72 = dma.hbm_to_vmem [thread:$0]  %s68, 64, %s70, [#allocation9]
    $region17: #{tpu_custom_call.1} parent=1 // pred_fallthru
      _
    // Predicated region
    $region18: #{tpu_custom_call.1} parent=1 // pred_check
      _
    $region19: #{tpu_custom_call.1} parent=1 // pred_check_branch
      %74 = sbr.rel (0) target = $region21
    $region20: #{tpu_custom_call.1} parent=1 // pred_region
      _
    $region21: #{tpu_custom_call.1} parent=1 // pred_fallthru
      _
    // Predicated region
    $region22: #{tpu_custom_call.1} parent=1 // pred_check
      _
    $region23: #{tpu_custom_call.1} parent=1 // pred_check_branch
      %76 = sbr.rel (0) target = $region25
    $region24: #{tpu_custom_call.1} parent=1 // pred_region
      _
    $region25: #{tpu_custom_call.1} parent=1 // pred_fallthru
      _
    // Predicated region
    $region26: #{tpu_custom_call.1} parent=1 // pred_check
      _
    $region27: #{tpu_custom_call.1} parent=1 // pred_check_branch
      %78 = sbr.rel (0) target = $region29
    $region28: #{tpu_custom_call.1} parent=1 // pred_region
      _
    $region29: #{tpu_custom_call.1} parent=1 // pred_fallthru
      _
    // Predicated region
    $region30: #{tpu_custom_call.1} parent=1 // pred_check
      _
    $region31: #{tpu_custom_call.1} parent=1 // pred_check_branch
      %80 = sbr.rel (0) target = $region33
    $region32: #{tpu_custom_call.1} parent=1 // pred_region
      _
    $region33: #{tpu_custom_call.1} parent=1 // pred_fallthru
      _
    // Predicated region
    $region34: #{tpu_custom_call.1} parent=1 // pred_check
      _
    $region35: #{tpu_custom_call.1} parent=1 // pred_check_branch
      %82 = sbr.rel (0) target = $region37
    $region36: #{tpu_custom_call.1} parent=1 // pred_region
      %84 = vsyncadd [#allocation9], 0
      %s86 = sshll.u32 %s8, 4
      %s87 = int_to_ptr.hbm [resolvable:$true] %s86
      %s88 = sshll.u32 [#allocation10], 4
      %s89 = int_to_ptr.vmem [resolvable:$true] %s88
      %91 = dma.hbm_to_vmem [thread:$0]  %s87, 128, %s89, [#allocation9]
    $region37: #{tpu_custom_call.1} parent=1 // pred_fallthru
      _
    // Predicated region
    $region38: #{tpu_custom_call.1} parent=1 // pred_check
      _
    $region39: #{tpu_custom_call.1} parent=1 // pred_check_branch
      %93 = sbr.rel (0) target = $region41
    $region40: #{tpu_custom_call.1} parent=1 // pred_region
      _
    $region41: #{tpu_custom_call.1} parent=1 // pred_fallthru
      _
    // Predicated region
    $region42: #{tpu_custom_call.1} parent=1 // pred_check
      _
    $region43: #{tpu_custom_call.1} parent=1 // pred_check_branch
      %95 = sbr.rel (0) target = $region45
    $region44: #{tpu_custom_call.1} parent=1 // pred_region
      _
    $region45: #{tpu_custom_call.1} parent=1 // pred_fallthru
      _
    // Predicated region
    $region46: #{tpu_custom_call.1} parent=1 // pred_check
      _
    $region47: #{tpu_custom_call.1} parent=1 // pred_check_branch
      %97 = sbr.rel (0) target = $region49
    $region48: #{tpu_custom_call.1} parent=1 // pred_region
      _
    $region49: #{tpu_custom_call.1} parent=1 // pred_fallthru
      _
    // Predicated region
    $region50: #{tpu_custom_call.1} parent=1 // pred_check
      _
    $region51: #{tpu_custom_call.1} parent=1 // pred_check_branch
      %99 = sbr.rel (0) target = $region53
    $region52: #{tpu_custom_call.1} parent=1 // pred_region
      _
    $region53: #{tpu_custom_call.1} parent=1 // pred_fallthru
      _
    // Predicated region
    $region54: #{tpu_custom_call.1} parent=1 // pred_check
      _
    $region55: #{tpu_custom_call.1} parent=1 // pred_check_branch
      %101 = sbr.rel (0) target = $region57
    $region56: #{tpu_custom_call.1} parent=1 // pred_region
      %103 = vsyncadd [#allocation12], 0
      %s104 = sshll.u32 %s13, 4
      %s105 = int_to_ptr.hbm [resolvable:$true] %s104
      %s106 = sshll.u32 [#allocation11], 4
      %s107 = int_to_ptr.vmem [resolvable:$true] %s106
      %112 = dma.hbm_to_vmem [thread:$0]  %s105, 1024, %s107, [#allocation12], 128, 128, 8
    $region57: #{tpu_custom_call.1} parent=1 // pred_fallthru
      _
    // Predicated region
    $region58: #{tpu_custom_call.1} parent=1 // pred_check
      _
    $region59: #{tpu_custom_call.1} parent=1 // pred_check_branch
      %114 = sbr.rel (0) target = $region61
    $region60: #{tpu_custom_call.1} parent=1 // pred_region
      _
    $region61: #{tpu_custom_call.1} parent=1 // pred_fallthru
      _
    // Predicated region
    $region62: #{tpu_custom_call.1} parent=1 // pred_check
      _
    $region63: #{tpu_custom_call.1} parent=1 // pred_check_branch
      %116 = sbr.rel (0) target = $region65
    $region64: #{tpu_custom_call.1} parent=1 // pred_region
      _
    $region65: #{tpu_custom_call.1} parent=1 // pred_fallthru
      _
    // Predicated region
    $region66: #{tpu_custom_call.1} parent=1 // pred_check
      _
    $region67: #{tpu_custom_call.1} parent=1 // pred_check_branch
      %118 = sbr.rel (0) target = $region69
    $region68: #{tpu_custom_call.1} parent=1 // pred_region
      _
    $region69: #{tpu_custom_call.1} parent=1 // pred_fallthru
      _
    // Predicated region
    $region70: #{tpu_custom_call.1} parent=1 // pred_check
      _
    $region71: #{tpu_custom_call.1} parent=1 // pred_check_branch
      %120 = sbr.rel (0) target = $region73
    $region72: #{tpu_custom_call.1} parent=1 // pred_region
      %122 = dma.done [#allocation3], 32
    $region73: #{tpu_custom_call.1} parent=1 // pred_fallthru
      _
    // Predicated region
    $region74: #{tpu_custom_call.1} parent=1 // pred_check
      _
    $region75: #{tpu_custom_call.1} parent=1 // pred_check_branch
      %124 = sbr.rel (0) target = $region77
    $region76: #{tpu_custom_call.1} parent=1 // pred_region
      %126 = dma.done [#allocation6], 64
    $region77: #{tpu_custom_call.1} parent=1 // pred_fallthru
      _
    // Predicated region
    $region78: #{tpu_custom_call.1} parent=1 // pred_check
      _
    $region79: #{tpu_custom_call.1} parent=1 // pred_check_branch
      %128 = sbr.rel (0) target = $region81
    $region80: #{tpu_custom_call.1} parent=1 // pred_region
      %130 = dma.done [#allocation6], 16384
    $region81: #{tpu_custom_call.1} parent=1 // pred_fallthru
      _
    // Predicated region
    $region82: #{tpu_custom_call.1} parent=1 // pred_check
      _
    $region83: #{tpu_custom_call.1} parent=1 // pred_check_branch
      %132 = sbr.rel (0) target = $region85
    $region84: #{tpu_custom_call.1} parent=1 // pred_region
      %134 = dma.done [#allocation9], 64
    $region85: #{tpu_custom_call.1} parent=1 // pred_fallthru
      _
    // Predicated region
    $region86: #{tpu_custom_call.1} parent=1 // pred_check
      _
    $region87: #{tpu_custom_call.1} parent=1 // pred_check_branch
      %136 = sbr.rel (0) target = $region89
    $region88: #{tpu_custom_call.1} parent=1 // pred_region
      %138 = dma.done [#allocation9], 128
    $region89: #{tpu_custom_call.1} parent=1 // pred_fallthru
      _
    // Predicated region
    $region90: #{tpu_custom_call.1} parent=1 // pred_check
      _
    $region91: #{tpu_custom_call.1} parent=1 // pred_check_branch
      %140 = sbr.rel (0) target = $region93
    $region92: #{tpu_custom_call.1} parent=1 // pred_region
      %142 = dma.done [#allocation12], 1024
    $region93: #{tpu_custom_call.1} parent=1 // pred_fallthru
      _
    %v143 = vld [vmem:[#allocation2] sm:$0x3]
    %v144 = vld [vmem:[#allocation10] sm:$0xff]
    %v145 = vld [vmem:[#allocation5] sm:$0xf]
    %v146 = vld [vmem:[#allocation7] sm:$0xff]
    %v147 = vld [vmem:[#allocation7 + $0x8] sm:$0xff]
    %v148 = vld [vmem:[#allocation7 + $0x10] sm:$0xff]
    %v149 = vld [vmem:[#allocation7 + $0x18] sm:$0xff]
    %v150 = vld [vmem:[#allocation7 + $0x20] sm:$0xff]
    %v151 = vld [vmem:[#allocation7 + $0x28] sm:$0xff]
    %v152 = vld [vmem:[#allocation7 + $0x30] sm:$0xff]
    %v153 = vld [vmem:[#allocation7 + $0x38] sm:$0xff]
    %v154 = vld [vmem:[#allocation7 + $0x40] sm:$0xff]
    %v155 = vld [vmem:[#allocation7 + $0x48] sm:$0xff]
    %v156 = vld [vmem:[#allocation7 + $0x50] sm:$0xff]
    %v157 = vld [vmem:[#allocation7 + $0x58] sm:$0xff]
    %v158 = vld [vmem:[#allocation7 + $0x60] sm:$0xff]
    %v159 = vld [vmem:[#allocation7 + $0x68] sm:$0xff]
    %v160 = vld [vmem:[#allocation7 + $0x70] sm:$0xff]
    %v161 = vld [vmem:[#allocation7 + $0x78] sm:$0xff]
    %v162 = vld [vmem:[#allocation7 + $0x80] sm:$0xff]
    %v163 = vld [vmem:[#allocation7 + $0x88] sm:$0xff]
    %v164 = vld [vmem:[#allocation7 + $0x90] sm:$0xff]
    %v165 = vld [vmem:[#allocation7 + $0x98] sm:$0xff]
    %v166 = vld [vmem:[#allocation7 + $0xa0] sm:$0xff]
    %v167 = vld [vmem:[#allocation7 + $0xa8] sm:$0xff]
    %v168 = vld [vmem:[#allocation7 + $0xb0] sm:$0xff]
    %v169 = vld [vmem:[#allocation7 + $0xb8] sm:$0xff]
    %v170 = vld [vmem:[#allocation7 + $0xc0] sm:$0xff]
    %v171 = vld [vmem:[#allocation7 + $0xc8] sm:$0xff]
    %v172 = vld [vmem:[#allocation7 + $0xd0] sm:$0xff]
    %v173 = vld [vmem:[#allocation7 + $0xd8] sm:$0xff]
    %v174 = vld [vmem:[#allocation7 + $0xe0] sm:$0xff]
    %v175 = vld [vmem:[#allocation7 + $0xe8] sm:$0xff]
    %v176 = vld [vmem:[#allocation7 + $0xf0] sm:$0xff]
    %v177 = vld [vmem:[#allocation7 + $0xf8] sm:$0xff]
    %v178 = vld [vmem:[#allocation7 + $0x100] sm:$0xff]
    %v179 = vld [vmem:[#allocation7 + $0x108] sm:$0xff]
    %v180 = vld [vmem:[#allocation7 + $0x110] sm:$0xff]
    %v181 = vld [vmem:[#allocation7 + $0x118] sm:$0xff]
    %v182 = vld [vmem:[#allocation7 + $0x120] sm:$0xff]
    %v183 = vld [vmem:[#allocation7 + $0x128] sm:$0xff]
    %v184 = vld [vmem:[#allocation7 + $0x130] sm:$0xff]
    %v185 = vld [vmem:[#allocation7 + $0x138] sm:$0xff]
    %v186 = vld [vmem:[#allocation7 + $0x140] sm:$0xff]
    %v187 = vld [vmem:[#allocation7 + $0x148] sm:$0xff]
    %v188 = vld [vmem:[#allocation7 + $0x150] sm:$0xff]
    %v189 = vld [vmem:[#allocation7 + $0x158] sm:$0xff]
    %v190 = vld [vmem:[#allocation7 + $0x160] sm:$0xff]
    %v191 = vld [vmem:[#allocation7 + $0x168] sm:$0xff]
    %v192 = vld [vmem:[#allocation7 + $0x170] sm:$0xff]
    %v193 = vld [vmem:[#allocation7 + $0x178] sm:$0xff]
    %v194 = vld [vmem:[#allocation7 + $0x180] sm:$0xff]
    %v195 = vld [vmem:[#allocation7 + $0x188] sm:$0xff]
    %v196 = vld [vmem:[#allocation7 + $0x190] sm:$0xff]
    %v197 = vld [vmem:[#allocation7 + $0x198] sm:$0xff]
    %v198 = vld [vmem:[#allocation7 + $0x1a0] sm:$0xff]
    %v199 = vld [vmem:[#allocation7 + $0x1a8] sm:$0xff]
    %v200 = vld [vmem:[#allocation7 + $0x1b0] sm:$0xff]
    %v201 = vld [vmem:[#allocation7 + $0x1b8] sm:$0xff]
    %v202 = vld [vmem:[#allocation7 + $0x1c0] sm:$0xff]
    %v203 = vld [vmem:[#allocation7 + $0x1c8] sm:$0xff]
    %v204 = vld [vmem:[#allocation7 + $0x1d0] sm:$0xff]
    %v205 = vld [vmem:[#allocation7 + $0x1d8] sm:$0xff]
    %v206 = vld [vmem:[#allocation7 + $0x1e0] sm:$0xff]
    %v207 = vld [vmem:[#allocation7 + $0x1e8] sm:$0xff]
    %v208 = vld [vmem:[#allocation7 + $0x1f0] sm:$0xff]
    %v209 = vld [vmem:[#allocation7 + $0x1f8] sm:$0xff]
    %v210 = vld [vmem:[#allocation7 + $0x200] sm:$0xff]
    %v211 = vld [vmem:[#allocation7 + $0x208] sm:$0xff]
    %v212 = vld [vmem:[#allocation7 + $0x210] sm:$0xff]
    %v213 = vld [vmem:[#allocation7 + $0x218] sm:$0xff]
    %v214 = vld [vmem:[#allocation7 + $0x220] sm:$0xff]
    %v215 = vld [vmem:[#allocation7 + $0x228] sm:$0xff]
    %v216 = vld [vmem:[#allocation7 + $0x230] sm:$0xff]
    %v217 = vld [vmem:[#allocation7 + $0x238] sm:$0xff]
    %v218 = vld [vmem:[#allocation7 + $0x240] sm:$0xff]
    %v219 = vld [vmem:[#allocation7 + $0x248] sm:$0xff]
    %v220 = vld [vmem:[#allocation7 + $0x250] sm:$0xff]
    %v221 = vld [vmem:[#allocation7 + $0x258] sm:$0xff]
    %v222 = vld [vmem:[#allocation7 + $0x260] sm:$0xff]
    %v223 = vld [vmem:[#allocation7 + $0x268] sm:$0xff]
    %v224 = vld [vmem:[#allocation7 + $0x270] sm:$0xff]
    %v225 = vld [vmem:[#allocation7 + $0x278] sm:$0xff]
    %v226 = vld [vmem:[#allocation7 + $0x280] sm:$0xff]
    %v227 = vld [vmem:[#allocation7 + $0x288] sm:$0xff]
    %v228 = vld [vmem:[#allocation7 + $0x290] sm:$0xff]
    %v229 = vld [vmem:[#allocation7 + $0x298] sm:$0xff]
    %v230 = vld [vmem:[#allocation7 + $0x2a0] sm:$0xff]
    %v231 = vld [vmem:[#allocation7 + $0x2a8] sm:$0xff]
    %v232 = vld [vmem:[#allocation7 + $0x2b0] sm:$0xff]
    %v233 = vld [vmem:[#allocation7 + $0x2b8] sm:$0xff]
    %v234 = vld [vmem:[#allocation7 + $0x2c0] sm:$0xff]
    %v235 = vld [vmem:[#allocation7 + $0x2c8] sm:$0xff]
    %v236 = vld [vmem:[#allocation7 + $0x2d0] sm:$0xff]
    %v237 = vld [vmem:[#allocation7 + $0x2d8] sm:$0xff]
    %v238 = vld [vmem:[#allocation7 + $0x2e0] sm:$0xff]
    %v239 = vld [vmem:[#allocation7 + $0x2e8] sm:$0xff]
    %v240 = vld [vmem:[#allocation7 + $0x2f0] sm:$0xff]
    %v241 = vld [vmem:[#allocation7 + $0x2f8] sm:$0xff]
    %v242 = vld [vmem:[#allocation7 + $0x300] sm:$0xff]
    %v243 = vld [vmem:[#allocation7 + $0x308] sm:$0xff]
    %v244 = vld [vmem:[#allocation7 + $0x310] sm:$0xff]
    %v245 = vld [vmem:[#allocation7 + $0x318] sm:$0xff]
    %v246 = vld [vmem:[#allocation7 + $0x320] sm:$0xff]
    %v247 = vld [vmem:[#allocation7 + $0x328] sm:$0xff]
    %v248 = vld [vmem:[#allocation7 + $0x330] sm:$0xff]
    %v249 = vld [vmem:[#allocation7 + $0x338] sm:$0xff]
    %v250 = vld [vmem:[#allocation7 + $0x340] sm:$0xff]
    %v251 = vld [vmem:[#allocation7 + $0x348] sm:$0xff]
    %v252 = vld [vmem:[#allocation7 + $0x350] sm:$0xff]
    %v253 = vld [vmem:[#allocation7 + $0x358] sm:$0xff]
    %v254 = vld [vmem:[#allocation7 + $0x360] sm:$0xff]
    %v255 = vld [vmem:[#allocation7 + $0x368] sm:$0xff]
    %v256 = vld [vmem:[#allocation7 + $0x370] sm:$0xff]
    %v257 = vld [vmem:[#allocation7 + $0x378] sm:$0xff]
    %v258 = vld [vmem:[#allocation7 + $0x380] sm:$0xff]
    %v259 = vld [vmem:[#allocation7 + $0x388] sm:$0xff]
    %v260 = vld [vmem:[#allocation7 + $0x390] sm:$0xff]
    %v261 = vld [vmem:[#allocation7 + $0x398] sm:$0xff]
    %v262 = vld [vmem:[#allocation7 + $0x3a0] sm:$0xff]
    %v263 = vld [vmem:[#allocation7 + $0x3a8] sm:$0xff]
    %v264 = vld [vmem:[#allocation7 + $0x3b0] sm:$0xff]
    %v265 = vld [vmem:[#allocation7 + $0x3b8] sm:$0xff]
    %v266 = vld [vmem:[#allocation7 + $0x3c0] sm:$0xff]
    %v267 = vld [vmem:[#allocation7 + $0x3c8] sm:$0xff]
    %v268 = vld [vmem:[#allocation7 + $0x3d0] sm:$0xff]
    %v269 = vld [vmem:[#allocation7 + $0x3d8] sm:$0xff]
    %v270 = vld [vmem:[#allocation7 + $0x3e0] sm:$0xff]
    %v271 = vld [vmem:[#allocation7 + $0x3e8] sm:$0xff]
    %v272 = vld [vmem:[#allocation7 + $0x3f0] sm:$0xff]
    %v273 = vld [vmem:[#allocation7 + $0x3f8] sm:$0xff]
    %v274 = vld [vmem:[#allocation8] sm:$0xf]
    %v276 = vperm.slane %v274, 0
    %v277 = vperm.slane %v274, 1
    %v278 = vperm.slane %v274, 2
    %v279 = vperm.slane %v274, 3
    %285 = vst [vmem:[#allocation1] ss:$4 sm:$0xff] %v145
    %v286 = vld.sshfl [vmem:[#allocation1] sm:$0xff pattern:$0x73625140]
    %v287 = vld.sshfl [vmem:[#allocation1 + $0x8] sm:$0xff pattern:$0x73625140]
    %290 = vmatpush.msra.mxu0 %v206
    %291 = vmatpush.msra.mxu0 %v202
    %292 = vmatpush.msra.mxu0 %v198
    %293 = vmatpush.msra.mxu0 %v194
    %294 = vmatpush.msra.mxu0 %v190
    %295 = vmatpush.msra.mxu0 %v186
    %296 = vmatpush.msra.mxu0 %v182
    %297 = vmatpush.msra.mxu0 %v178
    %298 = vmatpush.msra.mxu0 %v174
    %299 = vmatpush.msra.mxu0 %v170
    %300 = vmatpush.msra.mxu0 %v166
    %301 = vmatpush.msra.mxu0 %v162
    %302 = vmatpush.msra.mxu0 %v158
    %303 = vmatpush.msra.mxu0 %v154
    %304 = vmatpush.msra.mxu0 %v150
    %305 = vmatpush.msra.mxu0 %v146
    %306 = vmatmul.f32.gmra.mxu0 %v286
    %v307 = vpop.f32.mrf.mxu0
    %v308 = vadd.f32 %v276, %v307
    %309 = vdwg.mxu0
    %310 = vmatpush.msra.mxu0 %v270
    %311 = vmatpush.msra.mxu0 %v266
    %312 = vmatpush.msra.mxu0 %v262
    %313 = vmatpush.msra.mxu0 %v258
    %314 = vmatpush.msra.mxu0 %v254
    %315 = vmatpush.msra.mxu0 %v250
    %316 = vmatpush.msra.mxu0 %v246
    %317 = vmatpush.msra.mxu0 %v242
    %318 = vmatpush.msra.mxu0 %v238
    %319 = vmatpush.msra.mxu0 %v234
    %320 = vmatpush.msra.mxu0 %v230
    %321 = vmatpush.msra.mxu0 %v226
    %322 = vmatpush.msra.mxu0 %v222
    %323 = vmatpush.msra.mxu0 %v218
    %324 = vmatpush.msra.mxu0 %v214
    %325 = vmatpush.msra.mxu0 %v210
    %326 = vmatmul.f32.gmra.mxu0 %v287
    %v327 = vpop.f32.mrf.mxu0
    %v328 = vadd.f32 %v308, %v327
    %329 = vdwg.mxu0
    %330 = vmatpush.msra.mxu0 %v207
    %331 = vmatpush.msra.mxu0 %v203
    %332 = vmatpush.msra.mxu0 %v199
    %333 = vmatpush.msra.mxu0 %v195
    %334 = vmatpush.msra.mxu0 %v191
    %335 = vmatpush.msra.mxu0 %v187
    %336 = vmatpush.msra.mxu0 %v183
    %337 = vmatpush.msra.mxu0 %v179
    %338 = vmatpush.msra.mxu0 %v175
    %339 = vmatpush.msra.mxu0 %v171
    %340 = vmatpush.msra.mxu0 %v167
    %341 = vmatpush.msra.mxu0 %v163
    %342 = vmatpush.msra.mxu0 %v159
    %343 = vmatpush.msra.mxu0 %v155
    %344 = vmatpush.msra.mxu0 %v151
    %345 = vmatpush.msra.mxu0 %v147
    %346 = vmatmul.f32.gmra.mxu0 %v286
    %v347 = vpop.f32.mrf.mxu0
    %v348 = vadd.f32 %v277, %v347
    %349 = vdwg.mxu0
    %350 = vmatpush.msra.mxu0 %v271
    %351 = vmatpush.msra.mxu0 %v267
    %352 = vmatpush.msra.mxu0 %v263
    %353 = vmatpush.msra.mxu0 %v259
    %354 = vmatpush.msra.mxu0 %v255
    %355 = vmatpush.msra.mxu0 %v251
    %356 = vmatpush.msra.mxu0 %v247
    %357 = vmatpush.msra.mxu0 %v243
    %358 = vmatpush.msra.mxu0 %v239
    %359 = vmatpush.msra.mxu0 %v235
    %360 = vmatpush.msra.mxu0 %v231
    %361 = vmatpush.msra.mxu0 %v227
    %362 = vmatpush.msra.mxu0 %v223
    %363 = vmatpush.msra.mxu0 %v219
    %364 = vmatpush.msra.mxu0 %v215
    %365 = vmatpush.msra.mxu0 %v211
    %366 = vmatmul.f32.gmra.mxu0 %v287
    %v367 = vpop.f32.mrf.mxu0
    %v368 = vadd.f32 %v348, %v367
    %369 = vdwg.mxu0
    %370 = vmatpush.msra.mxu0 %v208
    %371 = vmatpush.msra.mxu0 %v204
    %372 = vmatpush.msra.mxu0 %v200
    %373 = vmatpush.msra.mxu0 %v196
    %374 = vmatpush.msra.mxu0 %v192
    %375 = vmatpush.msra.mxu0 %v188
    %376 = vmatpush.msra.mxu0 %v184
    %377 = vmatpush.msra.mxu0 %v180
    %378 = vmatpush.msra.mxu0 %v176
    %379 = vmatpush.msra.mxu0 %v172
    %380 = vmatpush.msra.mxu0 %v168
    %381 = vmatpush.msra.mxu0 %v164
    %382 = vmatpush.msra.mxu0 %v160
    %383 = vmatpush.msra.mxu0 %v156
    %384 = vmatpush.msra.mxu0 %v152
    %385 = vmatpush.msra.mxu0 %v148
    %386 = vmatmul.f32.gmra.mxu0 %v286
    %v387 = vpop.f32.mrf.mxu0
    %v388 = vadd.f32 %v278, %v387
    %389 = vdwg.mxu0
    %390 = vmatpush.msra.mxu0 %v272
    %391 = vmatpush.msra.mxu0 %v268
    %392 = vmatpush.msra.mxu0 %v264
    %393 = vmatpush.msra.mxu0 %v260
    %394 = vmatpush.msra.mxu0 %v256
    %395 = vmatpush.msra.mxu0 %v252
    %396 = vmatpush.msra.mxu0 %v248
    %397 = vmatpush.msra.mxu0 %v244
    %398 = vmatpush.msra.mxu0 %v240
    %399 = vmatpush.msra.mxu0 %v236
    %400 = vmatpush.msra.mxu0 %v232
    %401 = vmatpush.msra.mxu0 %v228
    %402 = vmatpush.msra.mxu0 %v224
    %403 = vmatpush.msra.mxu0 %v220
    %404 = vmatpush.msra.mxu0 %v216
    %405 = vmatpush.msra.mxu0 %v212
    %406 = vmatmul.f32.gmra.mxu0 %v287
    %v407 = vpop.f32.mrf.mxu0
    %v408 = vadd.f32 %v388, %v407
    %409 = vdwg.mxu0
    %410 = vmatpush.msra.mxu0 %v209
    %411 = vmatpush.msra.mxu0 %v205
    %412 = vmatpush.msra.mxu0 %v201
    %413 = vmatpush.msra.mxu0 %v197
    %414 = vmatpush.msra.mxu0 %v193
    %415 = vmatpush.msra.mxu0 %v189
    %416 = vmatpush.msra.mxu0 %v185
    %417 = vmatpush.msra.mxu0 %v181
    %418 = vmatpush.msra.mxu0 %v177
    %419 = vmatpush.msra.mxu0 %v173
    %420 = vmatpush.msra.mxu0 %v169
    %421 = vmatpush.msra.mxu0 %v165
    %422 = vmatpush.msra.mxu0 %v161
    %423 = vmatpush.msra.mxu0 %v157
    %424 = vmatpush.msra.mxu0 %v153
    %425 = vmatpush.msra.mxu0 %v149
    %426 = vmatmul.f32.gmra.mxu0 %v286
    %v427 = vpop.f32.mrf.mxu0
    %v428 = vadd.f32 %v279, %v427
    %429 = vdwg.mxu0
    %430 = vmatpush.msra.mxu0 %v273
    %431 = vmatpush.msra.mxu0 %v269
    %432 = vmatpush.msra.mxu0 %v265
    %433 = vmatpush.msra.mxu0 %v261
    %434 = vmatpush.msra.mxu0 %v257
    %435 = vmatpush.msra.mxu0 %v253
    %436 = vmatpush.msra.mxu0 %v249
    %437 = vmatpush.msra.mxu0 %v245
    %438 = vmatpush.msra.mxu0 %v241
    %439 = vmatpush.msra.mxu0 %v237
    %440 = vmatpush.msra.mxu0 %v233
    %441 = vmatpush.msra.mxu0 %v229
    %442 = vmatpush.msra.mxu0 %v225
    %443 = vmatpush.msra.mxu0 %v221
    %444 = vmatpush.msra.mxu0 %v217
    %445 = vmatpush.msra.mxu0 %v213
    %446 = vmatmul.f32.gmra.mxu0 %v287
    %v447 = vpop.f32.mrf.mxu0
    %v448 = vadd.f32 %v428, %v447
    %449 = vdwg.mxu0
    %v450 = vmax.f32 %v328, 0.0
    %v451 = vmax.f32 %v368, 0.0
    %v452 = vmax.f32 %v408, 0.0
    %v453 = vmax.f32 %v448, 0.0
    %v454 = vmax.f32 %v450, %v451
    %v455 = vmax.f32 %v452, %v453
    %v456 = vmax.f32 %v454, %v455
    %v457 = vld [vmem:[%s4] sm:$0xff]
    %v458 = vld [vmem:[%s4 + $0x8] sm:$0xff]
    %v459 = vld [vmem:[%s4 + $0x10] sm:$0xff]
    %v460 = vld [vmem:[%s4 + $0x18] sm:$0xff]
    %v461 = vld [vmem:[%s4 + $0x20] sm:$0xff]
    %v462 = vld [vmem:[%s4 + $0x28] sm:$0xff]
    %v463 = vld [vmem:[%s4 + $0x30] sm:$0xff]
    %v464 = vld [vmem:[%s4 + $0x38] sm:$0xff]
    %v465 = vld [vmem:[%s4 + $0x40] sm:$0xff]
    %v466 = vld [vmem:[%s4 + $0x48] sm:$0xff]
    %v467 = vld [vmem:[%s4 + $0x50] sm:$0xff]
    %v468 = vld [vmem:[%s4 + $0x58] sm:$0xff]
    %v469 = vld [vmem:[%s4 + $0x60] sm:$0xff]
    %v470 = vld [vmem:[%s4 + $0x68] sm:$0xff]
    %v471 = vld [vmem:[%s4 + $0x70] sm:$0xff]
    %v472 = vld [vmem:[%s4 + $0x78] sm:$0xff]
    %v473 = vld [vmem:[%s4 + $0x80] sm:$0xff]
    %v474 = vld [vmem:[%s4 + $0x88] sm:$0xff]
    %v475 = vld [vmem:[%s4 + $0x90] sm:$0xff]
    %v476 = vld [vmem:[%s4 + $0x98] sm:$0xff]
    %v477 = vld [vmem:[%s4 + $0xa0] sm:$0xff]
    %v478 = vld [vmem:[%s4 + $0xa8] sm:$0xff]
    %v479 = vld [vmem:[%s4 + $0xb0] sm:$0xff]
    %v480 = vld [vmem:[%s4 + $0xb8] sm:$0xff]
    %v481 = vld [vmem:[%s4 + $0xc0] sm:$0xff]
    %v482 = vld [vmem:[%s4 + $0xc8] sm:$0xff]
    %v483 = vld [vmem:[%s4 + $0xd0] sm:$0xff]
    %v484 = vld [vmem:[%s4 + $0xd8] sm:$0xff]
    %v485 = vld [vmem:[%s4 + $0xe0] sm:$0xff]
    %v486 = vld [vmem:[%s4 + $0xe8] sm:$0xff]
    %v487 = vld [vmem:[%s4 + $0xf0] sm:$0xff]
    %v488 = vld [vmem:[%s4 + $0xf8] sm:$0xff]
    %v489 = vld [vmem:[%s5] sm:$0x3]
    %v491 = vperm.slane %v489, 0
    %v492 = vperm.slane %v489, 1
    %495 = vmatpush.msra.mxu0 %v487
    %496 = vmatpush.msra.mxu0 %v485
    %497 = vmatpush.msra.mxu0 %v483
    %498 = vmatpush.msra.mxu0 %v481
    %499 = vmatpush.msra.mxu0 %v479
    %500 = vmatpush.msra.mxu0 %v477
    %501 = vmatpush.msra.mxu0 %v475
    %502 = vmatpush.msra.mxu0 %v473
    %503 = vmatpush.msra.mxu0 %v471
    %504 = vmatpush.msra.mxu0 %v469
    %505 = vmatpush.msra.mxu0 %v467
    %506 = vmatpush.msra.mxu0 %v465
    %507 = vmatpush.msra.mxu0 %v463
    %508 = vmatpush.msra.mxu0 %v461
    %509 = vmatpush.msra.mxu0 %v459
    %510 = vmatpush.msra.mxu0 %v457
    %511 = vmatmul.f32.gmra.mxu0 %v456
    %v512 = vpop.f32.mrf.mxu0
    %v513 = vadd.f32 %v491, %v512
    %514 = vdwg.mxu0
    %515 = vmatpush.msra.mxu0 %v488
    %516 = vmatpush.msra.mxu0 %v486
    %517 = vmatpush.msra.mxu0 %v484
    %518 = vmatpush.msra.mxu0 %v482
    %519 = vmatpush.msra.mxu0 %v480
    %520 = vmatpush.msra.mxu0 %v478
    %521 = vmatpush.msra.mxu0 %v476
    %522 = vmatpush.msra.mxu0 %v474
    %523 = vmatpush.msra.mxu0 %v472
    %524 = vmatpush.msra.mxu0 %v470
    %525 = vmatpush.msra.mxu0 %v468
    %526 = vmatpush.msra.mxu0 %v466
    %527 = vmatpush.msra.mxu0 %v464
    %528 = vmatpush.msra.mxu0 %v462
    %529 = vmatpush.msra.mxu0 %v460
    %530 = vmatpush.msra.mxu0 %v458
    %531 = vmatmul.f32.gmra.mxu0 %v456
    %v532 = vpop.f32.mrf.mxu0
    %v533 = vadd.f32 %v492, %v532
    %534 = vdwg.mxu0
    %v535 = vmax.f32 %v513, 0.0
    %v536 = vmax.f32 %v533, 0.0
    %538 = vrot.lane.b32.xlu0 %v535, 64
    %v539 = vpop.permute.xlu0 %538
    %v541 = vmax.f32 %v535, %v539
    %543 = vrot.lane.b32.xlu0 %v536, 64
    %v544 = vpop.permute.xlu0 %543
    %v546 = vmax.f32 %v536, %v544
    %v547 = vmax.f32 %v541, %v546
    %v548 = vld [vmem:[%s6] sm:$0xff]
    %v549 = vld [vmem:[%s6 + $0x8] sm:$0xff]
    %v550 = vld [vmem:[%s6 + $0x10] sm:$0xff]
    %v551 = vld [vmem:[%s6 + $0x18] sm:$0xff]
    %v552 = vld [vmem:[%s6 + $0x20] sm:$0xff]
    %v553 = vld [vmem:[%s6 + $0x28] sm:$0xff]
    %v554 = vld [vmem:[%s6 + $0x30] sm:$0xff]
    %v555 = vld [vmem:[%s6 + $0x38] sm:$0xff]
    %v556 = vld [vmem:[%s7] sm:$0x1]
    %v558 = vperm.slane %v556, 0
    %vm560 = vcmask 523264
    %v562 = vsel %vm560, %v547, 0
    %564 = vmatpush.msra.mxu0 0.0
    %565 = vmatpush.msra.mxu0 0.0
    %566 = vmatpush.msra.mxu0 0.0
    %567 = vmatpush.msra.mxu0 0.0
    %568 = vmatpush.msra.mxu0 0.0
    %569 = vmatpush.msra.mxu0 0.0
    %570 = vmatpush.msra.mxu0 0.0
    %571 = vmatpush.msra.mxu0 0.0
    %572 = vmatpush.msra.mxu0 %v555
    %573 = vmatpush.msra.mxu0 %v554
    %574 = vmatpush.msra.mxu0 %v553
    %575 = vmatpush.msra.mxu0 %v552
    %576 = vmatpush.msra.mxu0 %v551
    %577 = vmatpush.msra.mxu0 %v550
    %578 = vmatpush.msra.mxu0 %v549
    %579 = vmatpush.msra.mxu0 %v548
    %580 = vmatmul.f32.gmra.mxu0 %v562
    %v581 = vpop.f32.mrf.mxu0
    %v582 = vadd.f32 %v558, %v581
    %583 = vdwg.mxu0
    %v584 = vmax.f32 %v582, 0.0
    %v585 = vld [vmem:[%s9] sm:$0xff]
    %v586 = vld [vmem:[%s9 + $0x8] sm:$0xff]
    %v587 = vld [vmem:[%s9 + $0x10] sm:$0xf]
    %vm588 = vcmask 162816
    %v590 = vsel %vm588, %v584, 0
    %vm592 = vcmask 1043456
    %v594 = vsel %vm592, %v587, 0
    %596 = vmatpush.msra.mxu0 0.0
    %597 = vmatpush.msra.mxu0 0.0
    %598 = vmatpush.msra.mxu0 0.0
    %599 = vmatpush.msra.mxu0 0.0
    %600 = vmatpush.msra.mxu0 0.0
    %601 = vmatpush.msra.mxu0 0.0
    %602 = vmatpush.msra.mxu0 0.0
    %603 = vmatpush.msra.mxu0 0.0
    %604 = vmatpush.msra.mxu0 0.0
    %605 = vmatpush.msra.mxu0 0.0
    %606 = vmatpush.msra.mxu0 0.0
    %607 = vmatpush.msra.mxu0 0.0
    %608 = vmatpush.msra.mxu0 0.0
    %609 = vmatpush.msra.mxu0 %v594
    %610 = vmatpush.msra.mxu0 %v586
    %611 = vmatpush.msra.mxu0 %v585
    %612 = vmatmul.f32.gmra.mxu0 %v590
    %v613 = vpop.f32.mrf.mxu0
    %v614 = vadd.f32 0.0, %v613
    %615 = vdwg.mxu0
    %vm616 = vcmask 64512
    %v618 = vsel %vm616, %v143, 0
    %620 = vmatpush.msra.mxu0 0.0
    %621 = vmatpush.msra.mxu0 0.0
    %622 = vmatpush.msra.mxu0 0.0
    %623 = vmatpush.msra.mxu0 0.0
    %624 = vmatpush.msra.mxu0 0.0
    %625 = vmatpush.msra.mxu0 0.0
    %626 = vmatpush.msra.mxu0 0.0
    %627 = vmatpush.msra.mxu0 0.0
    %628 = vmatpush.msra.mxu0 0.0
    %629 = vmatpush.msra.mxu0 0.0
    %630 = vmatpush.msra.mxu0 0.0
    %631 = vmatpush.msra.mxu0 0.0
    %632 = vmatpush.msra.mxu0 0.0
    %633 = vmatpush.msra.mxu0 0.0
    %634 = vmatpush.msra.mxu0 0.0
    %635 = vmatpush.msra.mxu0 %v144
    %636 = vmatmul.f32.gmra.mxu0 %v618
    %v637 = vpop.f32.mrf.mxu0
    %v638 = vadd.f32 %v614, %v637
    %639 = vdwg.mxu0
    %v640 = vld [vmem:[%s10] sm:$0x1]
    %v642 = vperm.slane %v640, 0
    %v644 = vadd.f32 %v638, %v642
    %v645 = vmax.f32 %v644, 0.0
    %v646 = vld [vmem:[%s11] sm:$0xff]
    %v647 = vld [vmem:[%s11 + $0x8] sm:$0xff]
    %v648 = vld [vmem:[%s11 + $0x10] sm:$0xff]
    %v649 = vld [vmem:[%s11 + $0x18] sm:$0xff]
    %v650 = vld [vmem:[%s11 + $0x20] sm:$0xff]
    %v651 = vld [vmem:[%s11 + $0x28] sm:$0xff]
    %v652 = vld [vmem:[%s11 + $0x30] sm:$0xff]
    %v653 = vld [vmem:[%s11 + $0x38] sm:$0xff]
    %v654 = vld [vmem:[%s11 + $0x40] sm:$0xff]
    %v655 = vld [vmem:[%s11 + $0x48] sm:$0xff]
    %v656 = vld [vmem:[%s11 + $0x50] sm:$0xff]
    %v657 = vld [vmem:[%s11 + $0x58] sm:$0xff]
    %v658 = vld [vmem:[%s11 + $0x60] sm:$0xff]
    %v659 = vld [vmem:[%s11 + $0x68] sm:$0xff]
    %v660 = vld [vmem:[%s11 + $0x70] sm:$0xff]
    %v661 = vld [vmem:[%s11 + $0x78] sm:$0xff]
    %v662 = vld [vmem:[%s12] sm:$0x1]
    %v664 = vperm.slane %v662, 0
    %666 = vmatpush.msra.mxu0 %v661
    %667 = vmatpush.msra.mxu0 %v660
    %668 = vmatpush.msra.mxu0 %v659
    %669 = vmatpush.msra.mxu0 %v658
    %670 = vmatpush.msra.mxu0 %v657
    %671 = vmatpush.msra.mxu0 %v656
    %672 = vmatpush.msra.mxu0 %v655
    %673 = vmatpush.msra.mxu0 %v654
    %674 = vmatpush.msra.mxu0 %v653
    %675 = vmatpush.msra.mxu0 %v652
    %676 = vmatpush.msra.mxu0 %v651
    %677 = vmatpush.msra.mxu0 %v650
    %678 = vmatpush.msra.mxu0 %v649
    %679 = vmatpush.msra.mxu0 %v648
    %680 = vmatpush.msra.mxu0 %v647
    %681 = vmatpush.msra.mxu0 %v646
    %682 = vmatmul.f32.gmra.mxu0 %v645
    %v683 = vpop.f32.mrf.mxu0
    %v684 = vadd.f32 %v664, %v683
    %685 = vdwg.mxu0
    %v686 = vmax.f32 %v684, 0.0
    %v687 = vld [vmem:[#allocation11] sm:$0xff]
    %v688 = vld [vmem:[#allocation11 + $0x8] sm:$0xff]
    %v689 = vld [vmem:[#allocation11 + $0x10] sm:$0xff]
    %v690 = vld [vmem:[#allocation11 + $0x18] sm:$0xff]
    %v691 = vld [vmem:[#allocation11 + $0x20] sm:$0xff]
    %v692 = vld [vmem:[#allocation11 + $0x28] sm:$0xff]
    %v693 = vld [vmem:[#allocation11 + $0x30] sm:$0xff]
    %v694 = vld [vmem:[#allocation11 + $0x38] sm:$0xff]
    %v695 = vld [vmem:[%s14] sm:$0x1]
    %v697 = vperm.slane %v695, 0
    %v700 = vsel %vm560, %v686, 0
    %702 = vmatpush.msra.mxu0 0.0
    %703 = vmatpush.msra.mxu0 0.0
    %704 = vmatpush.msra.mxu0 0.0
    %705 = vmatpush.msra.mxu0 0.0
    %706 = vmatpush.msra.mxu0 0.0
    %707 = vmatpush.msra.mxu0 0.0
    %708 = vmatpush.msra.mxu0 0.0
    %709 = vmatpush.msra.mxu0 0.0
    %710 = vmatpush.msra.mxu0 %v694
    %711 = vmatpush.msra.mxu0 %v693
    %712 = vmatpush.msra.mxu0 %v692
    %713 = vmatpush.msra.mxu0 %v691
    %714 = vmatpush.msra.mxu0 %v690
    %715 = vmatpush.msra.mxu0 %v689
    %716 = vmatpush.msra.mxu0 %v688
    %717 = vmatpush.msra.mxu0 %v687
    %718 = vmatmul.f32.gmra.mxu0 %v700
    %v719 = vpop.f32.mrf.mxu0
    %v720 = vadd.f32 %v697, %v719
    %721 = vdwg.mxu0
    %v722 = vmax.f32 %v720, 0.0
    %v723 = vld [vmem:[%s15] sm:$0xff]
    %v724 = vld [vmem:[%s15 + $0x8] sm:$0xff]
    %v725 = vld [vmem:[%s15 + $0x10] sm:$0xff]
    %v726 = vld [vmem:[%s15 + $0x18] sm:$0xff]
    %v727 = vld [vmem:[%s15 + $0x20] sm:$0xff]
    %v728 = vld [vmem:[%s15 + $0x28] sm:$0xff]
    %v729 = vld [vmem:[%s15 + $0x30] sm:$0xff]
    %v730 = vld [vmem:[%s15 + $0x38] sm:$0xff]
    %v731 = vld [vmem:[%s16] sm:$0x1]
    %v733 = vperm.slane %v731, 0
    %v736 = vsel %vm560, %v722, 0
    %738 = vmatpush.msra.mxu0 0.0
    %739 = vmatpush.msra.mxu0 0.0
    %740 = vmatpush.msra.mxu0 0.0
    %741 = vmatpush.msra.mxu0 0.0
    %742 = vmatpush.msra.mxu0 0.0
    %743 = vmatpush.msra.mxu0 0.0
    %744 = vmatpush.msra.mxu0 0.0
    %745 = vmatpush.msra.mxu0 0.0
    %746 = vmatpush.msra.mxu0 %v730
    %747 = vmatpush.msra.mxu0 %v729
    %748 = vmatpush.msra.mxu0 %v728
    %749 = vmatpush.msra.mxu0 %v727
    %750 = vmatpush.msra.mxu0 %v726
    %751 = vmatpush.msra.mxu0 %v725
    %752 = vmatpush.msra.mxu0 %v724
    %753 = vmatpush.msra.mxu0 %v723
    %754 = vmatmul.f32.gmra.mxu0 %v736
    %v755 = vpop.f32.mrf.mxu0
    %v756 = vadd.f32 %v733, %v755
    %757 = vdwg.mxu0
    %vm758 = vcmask 33792
    %759 = vst.msk [vmem:[#allocation13] sm:$0x3] %vm758, %v756
    // Predicated region
    $region94: #{tpu_custom_call.1} parent=1 // pred_check
      _
    $region95: #{tpu_custom_call.1} parent=1 // pred_check_branch
      %761 = sbr.rel (0) target = $region97
    $region96: #{tpu_custom_call.1} parent=1 // pred_region
      %763 = vsyncadd [#allocation4], 0
      %s765 = sshll.u32 [#allocation13], 4
      %s766 = int_to_ptr.vmem [resolvable:$true] %s765
      %s767 = sshll.u32 %s17, 4
      %s768 = int_to_ptr.hbm [resolvable:$true] %s767
      %770 = dma.vmem_to_hbm [thread:$0]  %s766, 32, %s768, [#allocation4]
    $region97: #{tpu_custom_call.1} parent=1 // pred_fallthru
      _
    // Predicated region
    $region98: #{tpu_custom_call.1} parent=1 // pred_check
      _
    $region99: #{tpu_custom_call.1} parent=1 // pred_check_branch
      %772 = sbr.rel (0) target = $region101
    $region100: #{tpu_custom_call.1} parent=1 // pred_region
      %774 = dma.done [#allocation4], 32
    $region101: #{tpu_custom_call.1} parent=1 // pred_fallthru
      _
    %775 = vsyncpa [#allocation3], 1
    %776 = vsyncpa [#allocation6], 1
    %777 = vsyncpa [#allocation9], 1
    %778 = vsyncpa [#allocation12], 1
    %779 = vsyncpa [#allocation4], 1

</llo_original>
